<compile_context>
chip_gen: v5e
topology: v5e:2x2
jax: 0.10.0
libtpu: 0.0.40
codegen_flags: <defaults>
</compile_context>

<pallas_src>
import functools

import jax
import jax.numpy as jnp
from jax.experimental import pallas as pl
from jax.experimental.pallas import tpu as pltpu

H1, H2 = 256, 128          # hidden sizes from the PyTorch module
_TB_MAX = 1024             # max batch-tile rows (VMEM use ~2-3 MB at this size)


def _round_up(n: int, m: int) -> int:
    return ((n + m - 1) // m) * m


def _cdiv(a: int, b: int) -> int:
    return (a + b - 1) // b


def _mlp_kernel(x_ref, w1_ref, b1_ref, w2_ref, b2_ref, w3_ref, b3_ref, o_ref,
                *, apply_sigmoid: bool):
    # Cast x -> bf16 inside the kernel (cheap VPU work, hides under the MXU
    # body); the wrapper does NOT pre-cast, so x is read from HBM exactly once.
    x = x_ref[...].astype(jnp.bfloat16)

    # Layer 1: (tb, D)bf16 @ (D, 256)bf16 -> f32 accumulator; bias+ReLU in f32.
    h1 = jnp.dot(x, w1_ref[...], preferred_element_type=jnp.float32)
    h1 = jnp.maximum(h1 + b1_ref[...], 0.0)

    # Layer 2: (tb, 256)bf16 @ (256, 128)bf16 -> f32; bias+ReLU in f32.
    h2 = jnp.dot(h1.astype(jnp.bfloat16), w2_ref[...],
                 preferred_element_type=jnp.float32)
    h2 = jnp.maximum(h2 + b2_ref[...], 0.0)

    # Layer 3 (out_features == 1), emitted LANE-DENSE as a (1, tb) row:
    # contract w3_row (1, 128) with h2 (tb, 128) over the feature axis.
    # M=1/K=128 is only a few MXU pushes (negligible vs layers 1-2) and yields
    # the (1, tb) layout natively -> full unmasked vector stores.
    out_row = jax.lax.dot_general(
        w3_ref[...], h2,
        dimension_numbers=(((1,), (1,)), ((), ())),
        preferred_element_type=jnp.float32)
    out_row = out_row + b3_ref[0, 0]          # b3 scalar lives in SMEM

    if apply_sigmoid:                         # EUP work, essentially free
        out_row = 1.0 / (1.0 + jnp.exp(-out_row))

    o_ref[...] = out_row.astype(o_ref.dtype)


def _pick_tile(batch: int) -> int:
    if batch <= _TB_MAX:
        # One exact tile: block == full array, always a legal block shape.
        return batch
    # Multiple tiles: tb multiple of 128 so the lane-dense output blocks tile
    # cleanly, and >=2 (balanced) grid steps so the "parallel" batch axis can
    # land on both v7x TensorCores (no-op on single-TC v5e/v6e).
    return min(_TB_MAX, _round_up(_cdiv(batch, 2), 128))


@functools.partial(jax.jit, static_argnames=("apply_sigmoid",))
def mlp_forward(x, w1, b1, w2, b2, w3, b3, apply_sigmoid: bool = False):
    batch, d = x.shape

    # Canonical param layouts (no-ops when init_params output is passed).
    w1 = w1.astype(jnp.bfloat16)
    w2 = w2.astype(jnp.bfloat16)
    b1 = b1.reshape(1, H1).astype(jnp.float32)
    b2 = b2.reshape(1, H2).astype(jnp.float32)
    w3 = w3.reshape(1, H2).astype(jnp.float32)    # (1,128) row
    b3 = b3.reshape(1, 1).astype(jnp.float32)

    tb = _pick_tile(batch)
    num_tiles = _cdiv(batch, tb)
    padded = num_tiles * tb          # only the tiny output is padded; x is NOT copied

    resident = lambda shape: pl.BlockSpec(shape, lambda i: (0, 0))

    cost = pl.CostEstimate(
        flops=2 * batch * (d * H1 + H1 * H2 + H2),
        transcendentals=batch if apply_sigmoid else 0,
        bytes_accessed=(x.size * x.dtype.itemsize + w1.size * 2 + w2.size * 2
                        + (H1 + H2 + H2 + 1) * 4 + padded * 4),
    )

    out = pl.pallas_call(
        functools.partial(_mlp_kernel, apply_sigmoid=apply_sigmoid),
        out_shape=jax.ShapeDtypeStruct((1, padded), jnp.float32),
        grid=(num_tiles,),
        in_specs=[
            pl.BlockSpec((tb, d), lambda i: (i, 0)),            # x tile (pipelined, f32)
            resident((d, H1)),                                  # w1 bf16 (VMEM-resident)
            resident((1, H1)),                                  # b1 f32
            resident((H1, H2)),                                 # w2 bf16
            resident((1, H2)),                                  # b2 f32
            resident((1, H2)),                                  # w3 row f32
            pl.BlockSpec(memory_space=pltpu.MemorySpace.SMEM),  # b3 scalar
        ],
        out_specs=pl.BlockSpec((1, tb), lambda i: (0, i)),      # lane-dense output
        compiler_params=pltpu.CompilerParams(
            dimension_semantics=("parallel",)),
        cost_estimate=cost,
    )(x, w1, b1, w2, b2, w3, b3)

    # (1, padded) -> (batch, 1).  Rows are independent, so the garbage rows of a
    # partial last input tile only affect the padded tail, which is sliced off.
    return out.reshape(padded, 1)[:batch]


def init_params(key, input_size):
    """Deterministic init mimicking nn.Linear's uniform(-1/sqrt(fan_in))."""
    ks = jax.random.split(key, 6)

    def linear(kw, kb, fan_in, fan_out):
        bound = 1.0 / jnp.sqrt(fan_in)
        # stored as [in, out] (transposed vs torch's [out, in]) for x @ W
        w = jax.random.uniform(kw, (fan_in, fan_out), jnp.float32, -bound, bound)
        b = jax.random.uniform(kb, (1, fan_out), jnp.float32, -bound, bound)
        return w, b

    w1, b1 = linear(ks[0], ks[1], input_size, H1)
    w2, b2 = linear(ks[2], ks[3], H1, H2)
    w3, b3 = linear(ks[4], ks[5], H2, 1)
    # Canonical storage: bf16 matmul weights (no per-call cast in the hot path),
    # f32 biases, w3 as a (1, 128) row, b3 as a (1, 1) scalar.
    return (w1.astype(jnp.bfloat16), b1,
            w2.astype(jnp.bfloat16), b2,
            w3.reshape(1, H2), b3.reshape(1, 1))


def predict_proba(x, params):
    # sigmoid fused into the kernel epilogue (EUP slot) - no follow-up XLA op.
    return mlp_forward(x, *params, apply_sigmoid=True)


def predict(x, params, threshold=0.5):
    return (predict_proba(x, params) > threshold).astype(jnp.int32)


def _ref_forward_bf16(x, w1, b1, w2, b2, w3, b3):
    """Pure-JAX reference with the same bf16-input / f32-accumulate precision."""
    h1 = jnp.dot(x.astype(jnp.bfloat16), w1.astype(jnp.bfloat16),
                 preferred_element_type=jnp.float32) + b1.reshape(1, -1)
    h1 = jnp.maximum(h1, 0.0)
    h2 = jnp.dot(h1.astype(jnp.bfloat16), w2.astype(jnp.bfloat16),
                 preferred_element_type=jnp.float32) + b2.reshape(1, -1)
    h2 = jnp.maximum(h2, 0.0)
    return jnp.dot(h2, w3.reshape(1, -1).astype(jnp.float32).T) + b3.reshape(1, 1)


def _ref_forward_f32(x, w1, b1, w2, b2, w3, b3):
    h1 = jnp.maximum(x @ w1.astype(jnp.float32) + b1.reshape(1, -1), 0.0)
    h2 = jnp.maximum(h1 @ w2.astype(jnp.float32) + b2.reshape(1, -1), 0.0)
    return h2 @ w3.reshape(1, -1).astype(jnp.float32).T + b3.reshape(1, 1)


if __name__ == "__main__":
    key = jax.random.PRNGKey(0)
    k_x, k_p = jax.random.split(key)

    batch, input_size = 8, 32
    x = jax.random.normal(k_x, (batch, input_size), jnp.float32)
    params = init_params(k_p, input_size)

    # --- small batch: single exact tile ---
    logits = mlp_forward(x, *params)
    jax.block_until_ready(logits)
    assert logits.shape == (batch, 1)

    ref_bf16 = _ref_forward_bf16(x, *params)
    assert jnp.allclose(logits, ref_bf16, atol=2e-3, rtol=2e-3), \
        float(jnp.max(jnp.abs(logits - ref_bf16)))

    ref_f32 = _ref_forward_f32(x, *params)
    assert jnp.allclose(logits, ref_f32, atol=5e-2, rtol=5e-2), \
        float(jnp.max(jnp.abs(logits - ref_f32)))

    # --- larger batch: multi-tile grid with a partial last tile (no x pad copy) ---
    x_big = jax.random.normal(jax.random.PRNGKey(1), (2600, input_size), jnp.float32)
    logits_big = mlp_forward(x_big, *params)
    jax.block_until_ready(logits_big)
    assert logits_big.shape == (2600, 1)
    ref_big = _ref_forward_bf16(x_big, *params)
    assert jnp.allclose(logits_big, ref_big, atol=2e-3, rtol=2e-3), \
        float(jnp.max(jnp.abs(logits_big - ref_big)))

    # --- fused-sigmoid path + predict glue ---
    probs = predict_proba(x, params)
    preds = predict(x, params)
    jax.block_until_ready((probs, preds))
    assert probs.shape == (batch, 1) and preds.shape == (batch, 1)
    assert preds.dtype == jnp.int32
    assert jnp.allclose(probs, jax.nn.sigmoid(ref_bf16), atol=2e-3, rtol=2e-3)

    print("KERNEL_OK")
</pallas_src>

<mosaic_0001>
module attributes {stable_mosaic.version = 11 : i64} {
  func.func @_mlp_kernel(%arg0: i32, %arg1: memref<8x32xf32, #tpu.memory_space<vmem>>, %arg2: memref<32x256xbf16, #tpu.memory_space<vmem>>, %arg3: memref<1x256xf32, #tpu.memory_space<vmem>>, %arg4: memref<256x128xbf16, #tpu.memory_space<vmem>>, %arg5: memref<1x128xf32, #tpu.memory_space<vmem>>, %arg6: memref<1x128xf32, #tpu.memory_space<vmem>>, %arg7: memref<1x1xf32, #tpu.memory_space<smem>>, %arg8: memref<1x8xf32, #tpu.memory_space<vmem>>) attributes {dimension_semantics = [#tpu.dimension_semantics<parallel>], iteration_bounds = array<i64: 1>, scalar_prefetch = 0 : i64, scratch_operands = 0 : i64, tpu.core_type = #tpu.core_type<tc>, window_params = [{transform_indices = @transform_0, window_bounds = array<i64: 8, 32>}, {pipeline_mode = #tpu.pipeline_mode<synchronous>, transform_indices = @transform_1, window_bounds = array<i64: 32, 256>}, {pipeline_mode = #tpu.pipeline_mode<synchronous>, transform_indices = @transform_2, window_bounds = array<i64: 1, 256>}, {pipeline_mode = #tpu.pipeline_mode<synchronous>, transform_indices = @transform_3, window_bounds = array<i64: 256, 128>}, {pipeline_mode = #tpu.pipeline_mode<synchronous>, transform_indices = @transform_4, window_bounds = array<i64: 1, 128>}, {pipeline_mode = #tpu.pipeline_mode<synchronous>, transform_indices = @transform_5, window_bounds = array<i64: 1, 128>}, {transform_indices = @transform_6, window_bounds = array<i64: 1, 1>}, {transform_indices = @transform_7, window_bounds = array<i64: 1, 8>}]} {
    %c0 = arith.constant 0 : index
    %c0_0 = arith.constant 0 : index
    %0 = vector.load %arg1[%c0, %c0_0] : memref<8x32xf32, #tpu.memory_space<vmem>>, vector<8x32xf32>
    %1 = arith.truncf %0 : vector<8x32xf32> to vector<8x32xbf16>
    %c0_1 = arith.constant 0 : index
    %c0_2 = arith.constant 0 : index
    %2 = vector.load %arg2[%c0_1, %c0_2] : memref<32x256xbf16, #tpu.memory_space<vmem>>, vector<32x256xbf16>
    %cst = arith.constant dense<0.000000e+00> : vector<8x256xf32>
    %3 = tpu.matmul %1, %2, %cst {dimension_numbers = #tpu.dot_dimension_numbers<[1], [0], [0], [1], [0, 0, 1, 1], [], []>} : vector<8x32xbf16>, vector<32x256xbf16>, vector<8x256xf32> -> vector<8x256xf32>
    %c0_3 = arith.constant 0 : index
    %c0_4 = arith.constant 0 : index
    %4 = vector.load %arg3[%c0_3, %c0_4] : memref<1x256xf32, #tpu.memory_space<vmem>>, vector<1x256xf32>
    %5 = vector.broadcast %4 : vector<1x256xf32> to vector<8x256xf32>
    %6 = arith.addf %3, %5 : vector<8x256xf32>
    %cst_5 = arith.constant 0.000000e+00 : f32
    %7 = vector.broadcast %cst_5 : f32 to vector<8x256xf32>
    %8 = arith.maximumf %6, %7 : vector<8x256xf32>
    %9 = arith.truncf %8 : vector<8x256xf32> to vector<8x256xbf16>
    %c0_6 = arith.constant 0 : index
    %c0_7 = arith.constant 0 : index
    %10 = vector.load %arg4[%c0_6, %c0_7] : memref<256x128xbf16, #tpu.memory_space<vmem>>, vector<256x128xbf16>
    %cst_8 = arith.constant dense<0.000000e+00> : vector<8x128xf32>
    %11 = tpu.matmul %9, %10, %cst_8 {dimension_numbers = #tpu.dot_dimension_numbers<[1], [0], [0], [1], [0, 0, 1, 1], [], []>} : vector<8x256xbf16>, vector<256x128xbf16>, vector<8x128xf32> -> vector<8x128xf32>
    %c0_9 = arith.constant 0 : index
    %c0_10 = arith.constant 0 : index
    %12 = vector.load %arg5[%c0_9, %c0_10] : memref<1x128xf32, #tpu.memory_space<vmem>>, vector<1x128xf32>
    %13 = vector.broadcast %12 : vector<1x128xf32> to vector<8x128xf32>
    %14 = arith.addf %11, %13 : vector<8x128xf32>
    %cst_11 = arith.constant 0.000000e+00 : f32
    %15 = vector.broadcast %cst_11 : f32 to vector<8x128xf32>
    %16 = arith.maximumf %14, %15 : vector<8x128xf32>
    %c0_12 = arith.constant 0 : index
    %c0_13 = arith.constant 0 : index
    %17 = vector.load %arg6[%c0_12, %c0_13] : memref<1x128xf32, #tpu.memory_space<vmem>>, vector<1x128xf32>
    %cst_14 = arith.constant dense<0.000000e+00> : vector<1x8xf32>
    %18 = tpu.matmul %17, %16, %cst_14 {dimension_numbers = #tpu.dot_dimension_numbers<[1], [1], [0], [0], [0, 0, 1, 0], [], []>} : vector<1x128xf32>, vector<8x128xf32>, vector<1x8xf32> -> vector<1x8xf32>
    %c0_15 = arith.constant 0 : index
    %c0_16 = arith.constant 0 : index
    %19 = memref.load %arg7[%c0_15, %c0_16] : memref<1x1xf32, #tpu.memory_space<smem>>
    %20 = vector.broadcast %19 : f32 to vector<1x8xf32>
    %21 = arith.addf %18, %20 : vector<1x8xf32>
    %c0_17 = arith.constant 0 : index
    %c0_18 = arith.constant 0 : index
    %22 = vector.load %arg8[%c0_17, %c0_18] : memref<1x8xf32, #tpu.memory_space<vmem>>, vector<1x8xf32>
    tpu.vector_store %arg8[%c0_17, %c0_18], %21 {strides = array<i32>} : memref<1x8xf32, #tpu.memory_space<vmem>>, vector<1x8xf32>,
    return
  }
  func.func @transform_0(%arg0: i32) -> (i32, i32) {
    %c0_i32 = arith.constant 0 : i32
    %c0_i32_0 = arith.constant 0 : i32
    return %arg0, %c0_i32 : i32, i32
  }
  func.func @transform_1(%arg0: i32) -> (i32, i32) {
    %c0_i32 = arith.constant 0 : i32
    %c0_i32_0 = arith.constant 0 : i32
    %c0_i32_1 = arith.constant 0 : i32
    return %c0_i32, %c0_i32_0 : i32, i32
  }
  func.func @transform_2(%arg0: i32) -> (i32, i32) {
    %c0_i32 = arith.constant 0 : i32
    %c0_i32_0 = arith.constant 0 : i32
    %c0_i32_1 = arith.constant 0 : i32
    return %c0_i32, %c0_i32_0 : i32, i32
  }
  func.func @transform_3(%arg0: i32) -> (i32, i32) {
    %c0_i32 = arith.constant 0 : i32
    %c0_i32_0 = arith.constant 0 : i32
    %c0_i32_1 = arith.constant 0 : i32
    return %c0_i32, %c0_i32_0 : i32, i32
  }
  func.func @transform_4(%arg0: i32) -> (i32, i32) {
    %c0_i32 = arith.constant 0 : i32
    %c0_i32_0 = arith.constant 0 : i32
    %c0_i32_1 = arith.constant 0 : i32
    return %c0_i32, %c0_i32_0 : i32, i32
  }
  func.func @transform_5(%arg0: i32) -> (i32, i32) {
    %c0_i32 = arith.constant 0 : i32
    %c0_i32_0 = arith.constant 0 : i32
    %c0_i32_1 = arith.constant 0 : i32
    return %c0_i32, %c0_i32_0 : i32, i32
  }
  func.func @transform_6(%arg0: i32) -> (i32, i32) {
    %c0_i32 = arith.constant 0 : i32
    %c0_i32_0 = arith.constant 0 : i32
    %c0_i32_1 = arith.constant 0 : i32
    return %c0_i32, %c0_i32_0 : i32, i32
  }
  func.func @transform_7(%arg0: i32) -> (i32, i32) {
    %c0_i32 = arith.constant 0 : i32
    %c0_i32_0 = arith.constant 0 : i32
    return %c0_i32, %arg0 : i32, i32
  }
}

</mosaic_0001>

<llo_original>
// kernel: mlp_forward.1
$region0: #{mlp_forward.1}
  #allocation0 [shape = 'u32[]', space=smem, size = 0x4, offset = 0x4, fixed_abs, tag = 'smem constant byte address 0x4 - core index']
  #allocation1 [shape = 'u32[72,128]{1,0:T(1,128)}', space=vmem, size = 0x9000, scoped, tag = 'internal scratch']
  #allocation2 [shape = 'f32[1,1]{1,0:T(1,128)S(6)}', space=smem, size = 0x200, scoped, tag = 'scoped memory for mlp_forward.1']
  %s0 = inlined_call_operand.hbm [shape: f32[8,32], index: 0, kind: input, shape index: {}]
  %s1 = inlined_call_operand.hbm [shape: bf16[32,256], index: 1, kind: input, shape index: {}]
  %s2 = inlined_call_operand.vmem [shape: f32[1,256], index: 2, kind: input, shape index: {}]
  %s3 = inlined_call_operand.hbm [shape: bf16[256,128], index: 3, kind: input, shape index: {}]
  %s4 = inlined_call_operand.vmem [shape: f32[1,128], index: 4, kind: input, shape index: {}]
  %s5 = inlined_call_operand.vmem [shape: f32[1,128], index: 5, kind: input, shape index: {}]
  %s6 = inlined_call_operand.<no memory space> [shape: f32[1,1], index: 6, kind: input, shape index: {}]
  %s7 = inlined_call_operand.hbm [shape: f32[1,8], index: 7, kind: output, shape index: {}]
  %s8 = sld [smem:[#allocation0]]
  $region50: #{mlp_forward.1} parent=0
    _
  %s10 = ssub.s32 1, %s8
  %s11 = scalar_select 0, %s10, %s8
  %12 = sst [smem:[#allocation2]] %s6
  $region1: #{mlp_forward.1} parent=0
    #allocation3 [shape = 'u8[4096]{0}', space=vmem, size = 0x1000, scoped, tag = 'input window, operand 0, single buffered']
    #allocation4 [shape = 's32[1]{0}', space=sflag, size = 0x4, scoped, tag = 'scoped memory for mlp_forward.1']
    #allocation5 [shape = 's32[1]{0}', space=sflag, size = 0x4, scoped, tag = 'scoped memory for mlp_forward.1']
    #allocation6 [shape = 'u8[16384]{0}', space=vmem, size = 0x4000, scoped, tag = 'input window, operand 1, single buffered']
    #allocation7 [shape = 's32[1]{0}', space=sflag, size = 0x4, scoped, tag = 'scoped memory for mlp_forward.1']
    #allocation8 [shape = 'u8[65536]{0}', space=vmem, size = 0x10000, scoped, tag = 'input window, operand 3, single buffered']
    #allocation9 [shape = 'u8[512]{0}', space=vmem, size = 0x400, scoped, tag = 'output window, operand 0, single buffered']
    %13 = vsyncpa [#allocation4], 0
    %14 = vsyncpa [#allocation7], 0
    %15 = vsyncpa [#allocation5], 0
    // Predicated region
    $region2: #{mlp_forward.1} parent=1 // pred_check
      _
    $region3: #{mlp_forward.1} parent=1 // pred_check_branch
      %17 = sbr.rel (0) target = $region5
    $region4: #{mlp_forward.1} parent=1 // pred_region
      %19 = vsyncadd [#allocation4], 0
      %s21 = sshll.u32 %s0, 4
      %s22 = int_to_ptr.hbm [resolvable:$true] %s21
      %s23 = sshll.u32 [#allocation3], 4
      %s24 = int_to_ptr.vmem [resolvable:$true] %s23
      %26 = dma.hbm_to_vmem [thread:$0]  %s22, 128, %s24, [#allocation4]
    $region5: #{mlp_forward.1} parent=1 // pred_fallthru
      _
    // Predicated region
    $region6: #{mlp_forward.1} parent=1 // pred_check
      _
    $region7: #{mlp_forward.1} parent=1 // pred_check_branch
      %28 = sbr.rel (0) target = $region9
    $region8: #{mlp_forward.1} parent=1 // pred_region
      %30 = vsyncadd [#allocation7], 0
      %s31 = sshll.u32 %s1, 4
      %s32 = int_to_ptr.hbm [resolvable:$true] %s31
      %s33 = sshll.u32 [#allocation6], 4
      %s34 = int_to_ptr.vmem [resolvable:$true] %s33
      %39 = dma.hbm_to_vmem [thread:$0]  %s32, 512, %s34, [#allocation7], 128, 128, 8
    $region9: #{mlp_forward.1} parent=1 // pred_fallthru
      _
    // Predicated region
    $region10: #{mlp_forward.1} parent=1 // pred_check
      _
    $region11: #{mlp_forward.1} parent=1 // pred_check_branch
      %41 = sbr.rel (0) target = $region13
    $region12: #{mlp_forward.1} parent=1 // pred_region
      _
    $region13: #{mlp_forward.1} parent=1 // pred_fallthru
      _
    // Predicated region
    $region14: #{mlp_forward.1} parent=1 // pred_check
      _
    $region15: #{mlp_forward.1} parent=1 // pred_check_branch
      %43 = sbr.rel (0) target = $region17
    $region16: #{mlp_forward.1} parent=1 // pred_region
      %45 = vsyncadd [#allocation7], 0
      %s46 = sshll.u32 %s3, 4
      %s47 = int_to_ptr.hbm [resolvable:$true] %s46
      %s48 = sshll.u32 [#allocation8], 4
      %s49 = int_to_ptr.vmem [resolvable:$true] %s48
      %54 = dma.hbm_to_vmem [thread:$0]  %s47, 2048, %s49, [#allocation7], 64, 64, 4
    $region17: #{mlp_forward.1} parent=1 // pred_fallthru
      _
    // Predicated region
    $region18: #{mlp_forward.1} parent=1 // pred_check
      _
    $region19: #{mlp_forward.1} parent=1 // pred_check_branch
      %56 = sbr.rel (0) target = $region21
    $region20: #{mlp_forward.1} parent=1 // pred_region
      _
    $region21: #{mlp_forward.1} parent=1 // pred_fallthru
      _
    // Predicated region
    $region22: #{mlp_forward.1} parent=1 // pred_check
      _
    $region23: #{mlp_forward.1} parent=1 // pred_check_branch
      %58 = sbr.rel (0) target = $region25
    $region24: #{mlp_forward.1} parent=1 // pred_region
      _
    $region25: #{mlp_forward.1} parent=1 // pred_fallthru
      _
    // Predicated region
    $region26: #{mlp_forward.1} parent=1 // pred_check
      _
    $region27: #{mlp_forward.1} parent=1 // pred_check_branch
      %60 = sbr.rel (0) target = $region29
    $region28: #{mlp_forward.1} parent=1 // pred_region
      _
    $region29: #{mlp_forward.1} parent=1 // pred_fallthru
      _
    // Predicated region
    $region30: #{mlp_forward.1} parent=1 // pred_check
      _
    $region31: #{mlp_forward.1} parent=1 // pred_check_branch
      %62 = sbr.rel (0) target = $region33
    $region32: #{mlp_forward.1} parent=1 // pred_region
      %64 = dma.done [#allocation4], 128
    $region33: #{mlp_forward.1} parent=1 // pred_fallthru
      _
    // Predicated region
    $region34: #{mlp_forward.1} parent=1 // pred_check
      _
    $region35: #{mlp_forward.1} parent=1 // pred_check_branch
      %66 = sbr.rel (0) target = $region37
    $region36: #{mlp_forward.1} parent=1 // pred_region
      %68 = dma.done [#allocation7], 512
    $region37: #{mlp_forward.1} parent=1 // pred_fallthru
      _
    // Predicated region
    $region38: #{mlp_forward.1} parent=1 // pred_check
      _
    $region39: #{mlp_forward.1} parent=1 // pred_check_branch
      %70 = sbr.rel (0) target = $region41
    $region40: #{mlp_forward.1} parent=1 // pred_region
      %72 = dma.done [#allocation7], 2048
    $region41: #{mlp_forward.1} parent=1 // pred_fallthru
      _
    %v74 = vld [vmem:[#allocation3] sm:$0xff]
    %v75 = vpack.c.bf16 %v74, %v74
    %v76 = vld [vmem:[#allocation6] sm:$0xff]
    %v77 = vld [vmem:[#allocation6 + $0x8] sm:$0xff]
    %v78 = vld [vmem:[#allocation6 + $0x10] sm:$0xff]
    %v79 = vld [vmem:[#allocation6 + $0x18] sm:$0xff]
    %v80 = vld [vmem:[%s2] sm:$0x3]
    %v82 = vperm.slane %v80, 0
    %v83 = vperm.slane %v80, 1
    %v90 = vunpack.c.l.b16 %v76
    %v91 = vunpack.c.h.b16 %v76
    %v92 = vunpack.c.l.b16 %v77
    %v93 = vunpack.c.h.b16 %v77
    %v94 = vunpack.c.l.b16 %v78
    %v95 = vunpack.c.h.b16 %v78
    %v96 = vunpack.c.l.b16 %v79
    %v97 = vunpack.c.h.b16 %v79
    %v98 = vpack.c.b16 %v92, %v90
    %v99 = vpack.c.b16 %v93, %v91
    %v100 = vpack.c.b16 %v96, %v94
    %v101 = vpack.c.b16 %v97, %v95
    %vm106 = vcmask 261120
    %v108 = vsel %vm106, %v75, 0
    %110 = vmatpush.bf16.msra.mxu0 0
    %111 = vmatpush.bf16.msra.mxu0 0
    %112 = vmatpush.bf16.msra.mxu0 0
    %113 = vmatpush.bf16.msra.mxu0 0
    %114 = vmatpush.bf16.msra.mxu0 0
    %115 = vmatpush.bf16.msra.mxu0 0
    %116 = vmatpush.bf16.msra.mxu0 %v100
    %117 = vmatpush.bf16.msra.mxu0 %v98
    %118 = vmatmul.bf16.gmra.mxu0 %v108
    %v119 = vpop.f32.mrf.mxu0
    %v120 = vadd.f32 %v82, %v119
    %v121 = vpop.f32.mrf.mxu0
    %122 = vdwg.mxu0
    %123 = vmatpush.bf16.msra.mxu0 0
    %124 = vmatpush.bf16.msra.mxu0 0
    %125 = vmatpush.bf16.msra.mxu0 0
    %126 = vmatpush.bf16.msra.mxu0 0
    %127 = vmatpush.bf16.msra.mxu0 0
    %128 = vmatpush.bf16.msra.mxu0 0
    %129 = vmatpush.bf16.msra.mxu0 %v101
    %130 = vmatpush.bf16.msra.mxu0 %v99
    %131 = vmatmul.bf16.gmra.mxu0 %v108
    %v132 = vpop.f32.mrf.mxu0
    %v133 = vadd.f32 %v83, %v132
    %v134 = vpop.f32.mrf.mxu0
    %135 = vdwg.mxu0
    %v136 = vmax.f32 %v120, 0.0
    %v137 = vmax.f32 %v133, 0.0
    %v138 = vpack.c.bf16 %v136, %v136
    %v139 = vpack.c.bf16 %v137, %v137
    %v140 = vld [vmem:[#allocation8] sm:$0xf]
    %v141 = vld [vmem:[#allocation8 + $0x4] sm:$0xf]
    %v142 = vld [vmem:[#allocation8 + $0x8] sm:$0xf]
    %v143 = vld [vmem:[#allocation8 + $0xc] sm:$0xf]
    %v144 = vld [vmem:[#allocation8 + $0x10] sm:$0xf]
    %v145 = vld [vmem:[#allocation8 + $0x14] sm:$0xf]
    %v146 = vld [vmem:[#allocation8 + $0x18] sm:$0xf]
    %v147 = vld [vmem:[#allocation8 + $0x1c] sm:$0xf]
    %v148 = vld [vmem:[#allocation8 + $0x20] sm:$0xf]
    %v149 = vld [vmem:[#allocation8 + $0x24] sm:$0xf]
    %v150 = vld [vmem:[#allocation8 + $0x28] sm:$0xf]
    %v151 = vld [vmem:[#allocation8 + $0x2c] sm:$0xf]
    %v152 = vld [vmem:[#allocation8 + $0x30] sm:$0xf]
    %v153 = vld [vmem:[#allocation8 + $0x34] sm:$0xf]
    %v154 = vld [vmem:[#allocation8 + $0x38] sm:$0xf]
    %v155 = vld [vmem:[#allocation8 + $0x3c] sm:$0xf]
    %v156 = vld [vmem:[#allocation8 + $0x40] sm:$0xf]
    %v157 = vld [vmem:[#allocation8 + $0x44] sm:$0xf]
    %v158 = vld [vmem:[#allocation8 + $0x48] sm:$0xf]
    %v159 = vld [vmem:[#allocation8 + $0x4c] sm:$0xf]
    %v160 = vld [vmem:[#allocation8 + $0x50] sm:$0xf]
    %v161 = vld [vmem:[#allocation8 + $0x54] sm:$0xf]
    %v162 = vld [vmem:[#allocation8 + $0x58] sm:$0xf]
    %v163 = vld [vmem:[#allocation8 + $0x5c] sm:$0xf]
    %v164 = vld [vmem:[#allocation8 + $0x60] sm:$0xf]
    %v165 = vld [vmem:[#allocation8 + $0x64] sm:$0xf]
    %v166 = vld [vmem:[#allocation8 + $0x68] sm:$0xf]
    %v167 = vld [vmem:[#allocation8 + $0x6c] sm:$0xf]
    %v168 = vld [vmem:[#allocation8 + $0x70] sm:$0xf]
    %v169 = vld [vmem:[#allocation8 + $0x74] sm:$0xf]
    %v170 = vld [vmem:[#allocation8 + $0x78] sm:$0xf]
    %v171 = vld [vmem:[#allocation8 + $0x7c] sm:$0xf]
    %v172 = vld [vmem:[%s4] sm:$0x1]
    %v174 = vperm.slane %v172, 0
    %v208 = vunpack.c.l.b16 %v140
    %v209 = vunpack.c.l.b16 %v141
    %v210 = vunpack.c.l.b16 %v142
    %v211 = vunpack.c.l.b16 %v143
    %v212 = vunpack.c.l.b16 %v144
    %v213 = vunpack.c.l.b16 %v145
    %v214 = vunpack.c.l.b16 %v146
    %v215 = vunpack.c.l.b16 %v147
    %v216 = vunpack.c.l.b16 %v148
    %v217 = vunpack.c.l.b16 %v149
    %v218 = vunpack.c.l.b16 %v150
    %v219 = vunpack.c.l.b16 %v151
    %v220 = vunpack.c.l.b16 %v152
    %v221 = vunpack.c.l.b16 %v153
    %v222 = vunpack.c.l.b16 %v154
    %v223 = vunpack.c.l.b16 %v155
    %v224 = vunpack.c.l.b16 %v156
    %v225 = vunpack.c.l.b16 %v157
    %v226 = vunpack.c.l.b16 %v158
    %v227 = vunpack.c.l.b16 %v159
    %v228 = vunpack.c.l.b16 %v160
    %v229 = vunpack.c.l.b16 %v161
    %v230 = vunpack.c.l.b16 %v162
    %v231 = vunpack.c.l.b16 %v163
    %v232 = vunpack.c.l.b16 %v164
    %v233 = vunpack.c.l.b16 %v165
    %v234 = vunpack.c.l.b16 %v166
    %v235 = vunpack.c.l.b16 %v167
    %v236 = vunpack.c.l.b16 %v168
    %v237 = vunpack.c.l.b16 %v169
    %v238 = vunpack.c.l.b16 %v170
    %v239 = vunpack.c.l.b16 %v171
    %v240 = vpack.c.b16 %v209, %v208
    %v241 = vpack.c.b16 %v211, %v210
    %v242 = vpack.c.b16 %v213, %v212
    %v243 = vpack.c.b16 %v215, %v214
    %v244 = vpack.c.b16 %v217, %v216
    %v245 = vpack.c.b16 %v219, %v218
    %v246 = vpack.c.b16 %v221, %v220
    %v247 = vpack.c.b16 %v223, %v222
    %v248 = vpack.c.b16 %v225, %v224
    %v249 = vpack.c.b16 %v227, %v226
    %v250 = vpack.c.b16 %v229, %v228
    %v251 = vpack.c.b16 %v231, %v230
    %v252 = vpack.c.b16 %v233, %v232
    %v253 = vpack.c.b16 %v235, %v234
    %v254 = vpack.c.b16 %v237, %v236
    %v255 = vpack.c.b16 %v239, %v238
    %272 = vmatpush.bf16.msra.mxu0 %v247
    %273 = vmatpush.bf16.msra.mxu0 %v246
    %274 = vmatpush.bf16.msra.mxu0 %v245
    %275 = vmatpush.bf16.msra.mxu0 %v244
    %276 = vmatpush.bf16.msra.mxu0 %v243
    %277 = vmatpush.bf16.msra.mxu0 %v242
    %278 = vmatpush.bf16.msra.mxu0 %v241
    %279 = vmatpush.bf16.msra.mxu0 %v240
    %280 = vmatmul.bf16.gmra.mxu0 %v138
    %v281 = vpop.f32.mrf.mxu0
    %v282 = vadd.f32 %v174, %v281
    %v283 = vpop.f32.mrf.mxu0
    %284 = vdwg.mxu0
    %285 = vmatpush.bf16.msra.mxu0 %v255
    %286 = vmatpush.bf16.msra.mxu0 %v254
    %287 = vmatpush.bf16.msra.mxu0 %v253
    %288 = vmatpush.bf16.msra.mxu0 %v252
    %289 = vmatpush.bf16.msra.mxu0 %v251
    %290 = vmatpush.bf16.msra.mxu0 %v250
    %291 = vmatpush.bf16.msra.mxu0 %v249
    %292 = vmatpush.bf16.msra.mxu0 %v248
    %293 = vmatmul.bf16.gmra.mxu0 %v139
    %v294 = vpop.f32.mrf.mxu0
    %v295 = vadd.f32 %v282, %v294
    %v296 = vpop.f32.mrf.mxu0
    %297 = vdwg.mxu0
    %v298 = vmax.f32 %v295, 0.0
    %v299 = vld [vmem:[%s5] sm:$0x1]
    %s300 = sld [smem:[#allocation2]]
    %v301 = vstv %s300
    %302 = vmatpush.xpose.msra.mxu0 0.0
    %303 = vmatpush.xpose.msra.mxu0 0.0
    %304 = vmatpush.xpose.msra.mxu0 0.0
    %305 = vmatpush.xpose.msra.mxu0 0.0
    %306 = vmatpush.xpose.msra.mxu0 0.0
    %307 = vmatpush.xpose.msra.mxu0 0.0
    %308 = vmatpush.xpose.msra.mxu0 0.0
    %309 = vmatpush.xpose.msra.mxu0 0.0
    %310 = vmatpush.xpose.msra.mxu0 0.0
    %311 = vmatpush.xpose.msra.mxu0 0.0
    %312 = vmatpush.xpose.msra.mxu0 0.0
    %313 = vmatpush.xpose.msra.mxu0 0.0
    %314 = vmatpush.xpose.msra.mxu0 0.0
    %315 = vmatpush.xpose.msra.mxu0 0.0
    %316 = vmatpush.xpose.msra.mxu0 0.0
    %317 = vmatpush.xpose.msra.mxu0 %v298
    %318 = vmatmul.f32.gmra.mxu0 %v299
    %v319 = vpop.f32.mrf.mxu0
    %v320 = vadd.f32 %v301, %v319
    %321 = vdwg.mxu0
    %vm322 = vcmask 57344
    %323 = vst.msk [vmem:[#allocation9] sm:$0x1] %vm322, %v320
    // Predicated region
    $region42: #{mlp_forward.1} parent=1 // pred_check
      _
    $region43: #{mlp_forward.1} parent=1 // pred_check_branch
      %325 = sbr.rel (0) target = $region45
    $region44: #{mlp_forward.1} parent=1 // pred_region
      %327 = vsyncadd [#allocation5], 0
      %s329 = sshll.u32 [#allocation9], 4
      %s330 = int_to_ptr.vmem [resolvable:$true] %s329
      %s331 = sshll.u32 %s7, 4
      %s332 = int_to_ptr.hbm [resolvable:$true] %s331
      %334 = dma.vmem_to_hbm [thread:$0]  %s330, 16, %s332, [#allocation5]
    $region45: #{mlp_forward.1} parent=1 // pred_fallthru
      _
    // Predicated region
    $region46: #{mlp_forward.1} parent=1 // pred_check
      _
    $region47: #{mlp_forward.1} parent=1 // pred_check_branch
      %336 = sbr.rel (0) target = $region49
    $region48: #{mlp_forward.1} parent=1 // pred_region
      %338 = dma.done [#allocation5], 16
    $region49: #{mlp_forward.1} parent=1 // pred_fallthru
      _
    %339 = vsyncpa [#allocation4], 1
    %340 = vsyncpa [#allocation7], 1
    %341 = vsyncpa [#allocation5], 1

</llo_original>
